<compile_context>
chip_gen: v5e
topology: v5e:2x2
jax: 0.10.0
libtpu: 0.0.40
codegen_flags: <defaults>
</compile_context>

<pallas_src>
import jax
import jax.numpy as jnp
from jax.experimental import pallas as pl
from jax.experimental.pallas import tpu as pltpu


def _cdiv(a, b):
    return -(-a // b)


def _round_up(x, m):
    return ((x + m - 1) // m) * m


# ----------------------------------------------------------------------------
# Kernel
# ----------------------------------------------------------------------------
def _make_mlp_kernel(num_linears: int, tb: int, chunk: int):
    """Fused MLP kernel over one batch tile of `tb` rows.

    Ref order: (x, W1, b1, ..., Wn, bn, out).
    Weights arrive as bf16 (in_features, out_features); biases as f32 (1, out).
    ReLU after every layer except the last; last activation is identity.
    The batch tile is strip-mined into static `chunk`-row sub-chunks so the
    per-chunk working set stays in vregs while the DMA tile stays large.
    """

    def kernel(x_ref, *refs):
        out_ref = refs[-1]
        wb_refs = refs[:-1]

        # Weights/biases are tiny; load once and keep in vregs for all chunks.
        ws = [wb_refs[2 * i][...] for i in range(num_linears)]          # bf16
        bs = [wb_refs[2 * i + 1][...] for i in range(num_linears)]      # f32

        for r0 in range(0, tb, chunk):                # static unrolled loop
            rows = min(chunk, tb - r0)                # multiple of 8 by constr.
            h = x_ref[r0:r0 + rows, :].astype(jnp.bfloat16)
            for i in range(num_linears):
                z = jnp.dot(h, ws[i], preferred_element_type=jnp.float32) + bs[i]
                if i < num_linears - 1:
                    # ReLU in f32 (v5e has no bf16 VALU); carry bf16 onward.
                    h = jnp.maximum(z, 0.0).astype(jnp.bfloat16)
                else:
                    h = z
            out_ref[r0:r0 + rows, :] = h.astype(out_ref.dtype)

    return kernel


# ----------------------------------------------------------------------------
# Wrapper
# ----------------------------------------------------------------------------
def mlp_forward(x, params, *, max_tile=2048, chunk=512):
    """Run the fused MLP Pallas kernel.

    x:        (batch, input_dim) float32
    params:   list of (W, b), W shape (in_features, out_features), b (1, out).
    max_tile: max batch-tile rows per grid step (big tiles amortize grid/DMA
              overhead; even 8192 fits comfortably in scoped VMEM here).
    chunk:    in-kernel strip-mine sub-chunk (rows) to bound vreg pressure.
    """
    num_linears = len(params)
    batch, input_dim = x.shape
    out_dim = params[-1][0].shape[1]

    # Batch tiling: split into ~equal sublane-aligned tiles capped at max_tile,
    # minimizing padded-row waste (padded rows are full-cost compute + HBM).
    num_tiles = max(1, _cdiv(batch, max_tile))
    tb = max(8, _round_up(_cdiv(batch, num_tiles), 8))
    batch_pad = _round_up(batch, tb)
    chunk = max(8, min(_round_up(chunk, 8), tb))      # multiple of 8, <= tb

    x_p = x if x.dtype == jnp.float32 else x.astype(jnp.float32)
    if batch_pad != batch:
        x_p = jnp.pad(x_p, ((0, batch_pad - batch), (0, 0)))

    # Flatten params; cast weights to bf16 for the MXU.  No output padding:
    # the out BlockSpec last dim equals the full array dim, keeping HBM
    # writeback at out_dim*4 bytes/row.
    flat = []
    in_specs = [pl.BlockSpec((tb, input_dim), lambda i: (i, 0))]
    for (w, b) in params:
        w = w.astype(jnp.bfloat16)
        b = b.astype(jnp.float32)
        flat.append(w)
        flat.append(b)
        # Constant index_map -> weights/biases stay resident across the grid.
        in_specs.append(pl.BlockSpec(w.shape, lambda i: (0, 0)))
        in_specs.append(pl.BlockSpec(b.shape, lambda i: (0, 0)))

    # Advisory cost estimate so XLA can schedule around this call.
    flops = 0
    bytes_accessed = x_p.size * 4 + batch_pad * out_dim * 4
    for w, b in zip(flat[0::2], flat[1::2]):
        flops += 2 * batch_pad * w.shape[0] * w.shape[1]
        bytes_accessed += w.size * 2 + b.size * 4
    cost = pl.CostEstimate(flops=flops, transcendentals=0,
                           bytes_accessed=bytes_accessed)

    kernel = _make_mlp_kernel(num_linears, tb, chunk)
    out = pl.pallas_call(
        kernel,
        out_shape=jax.ShapeDtypeStruct((batch_pad, out_dim), jnp.float32),
        grid_spec=pltpu.PrefetchScalarGridSpec(
            num_scalar_prefetch=0,
            grid=(batch_pad // tb,),
            in_specs=in_specs,
            out_specs=pl.BlockSpec((tb, out_dim), lambda i: (i, 0)),
        ),
        compiler_params=pltpu.CompilerParams(
            dimension_semantics=("parallel",),
        ),
        cost_estimate=cost,
    )(x_p, *flat)

    return out[:batch, :]


# ----------------------------------------------------------------------------
# Parameter construction (mirrors Network.__init__ / network_init)
# ----------------------------------------------------------------------------
def _orthogonal(key, rows, cols, dtype=jnp.float32):
    """Equivalent of nn.init.orthogonal_ for a (rows, cols) weight matrix."""
    flipped = rows < cols
    a_shape = (cols, rows) if flipped else (rows, cols)
    a = jax.random.normal(key, a_shape, dtype=jnp.float32)
    q, r = jnp.linalg.qr(a)
    diag = jnp.diagonal(r)
    # copysign-style correction: never zero a column if a diagonal entry is 0.
    d = jnp.where(diag == 0, 1.0, jnp.sign(diag))
    q = q * d[None, :]
    if flipped:
        q = q.T
    return q.astype(dtype)


def build_network_params(key, layer_num, input_dim, output_dim, hidden_dim):
    """Returns list of (W_t, b): W_t shape (in, out), b shape (1, out)."""
    layers_unit = [input_dim] + [hidden_dim] * (layer_num - 1)
    dims = list(zip(layers_unit[:-1], layers_unit[1:])) + [(layers_unit[-1], output_dim)]
    params = []
    for (din, dout) in dims:
        key, sub = jax.random.split(key)
        w_pt = _orthogonal(sub, dout, din)            # PyTorch layout (out, in)
        w_t = jnp.transpose(w_pt)                     # (in, out) for x @ W
        b = jnp.zeros((1, dout), dtype=jnp.float32)   # bias zeroed
        params.append((w_t, b))
    return params


# ----------------------------------------------------------------------------
# Pure-JAX reference (mirrors the kernel's bf16-operand / f32-accumulate math)
# ----------------------------------------------------------------------------
def mlp_reference(x, params):
    h = x.astype(jnp.bfloat16)
    n = len(params)
    for i, (w, b) in enumerate(params):
        z = jnp.dot(h, w.astype(jnp.bfloat16),
                    preferred_element_type=jnp.float32) + b.astype(jnp.float32)
        if i < n - 1:
            h = jnp.maximum(z, 0.0).astype(jnp.bfloat16)
        else:
            h = z
    return h


# ----------------------------------------------------------------------------
# Main
# ----------------------------------------------------------------------------
if __name__ == "__main__":
    # Network(layer_num=3, input_dim=8, output_dim=4, hidden_dim=32)
    layer_num, input_dim, output_dim, hidden_dim = 3, 8, 4, 32

    key = jax.random.PRNGKey(0)
    key_x, key_x2, key_x3, key_p = jax.random.split(key, 4)
    params = build_network_params(key_p, layer_num, input_dim, output_dim, hidden_dim)

    # Small shape from the module example (single tile, padded batch rows).
    batch = 2
    x = jax.random.normal(key_x, (batch, input_dim), dtype=jnp.float32)
    out = jax.block_until_ready(mlp_forward(x, params))
    ref = mlp_reference(x, params)
    assert out.shape == (batch, output_dim)
    assert jnp.allclose(out, ref, atol=1e-3, rtol=1e-3), "Pallas mismatch (batch=2)"

    # Non-aligned batch with a small tile cap: exercises the multi-tile grid
    # path with the waste-minimizing tile choice (3 tiles of 48 rows).
    batch2 = 130
    x2 = jax.random.normal(key_x2, (batch2, input_dim), dtype=jnp.float32)
    out2 = jax.block_until_ready(mlp_forward(x2, params, max_tile=64))
    ref2 = mlp_reference(x2, params)
    assert out2.shape == (batch2, output_dim)
    assert jnp.allclose(out2, ref2, atol=1e-3, rtol=1e-3), "Pallas mismatch (batch=130)"

    # Larger batch with default big tile: exercises the in-kernel strip-mining
    # (single 1104-row tile processed in 512/512/80-row sub-chunks).
    batch3 = 1100
    x3 = jax.random.normal(key_x3, (batch3, input_dim), dtype=jnp.float32)
    out3 = jax.block_until_ready(mlp_forward(x3, params))
    ref3 = mlp_reference(x3, params)
    assert out3.shape == (batch3, output_dim)
    assert jnp.allclose(out3, ref3, atol=1e-3, rtol=1e-3), "Pallas mismatch (batch=1100)"

    print("KERNEL_OK")
</pallas_src>

<mosaic_0001>
module attributes {stable_mosaic.version = 11 : i64} {
  func.func @kernel(%arg0: i32, %arg1: memref<8x8xf32, #tpu.memory_space<vmem>>, %arg2: memref<8x32xbf16, #tpu.memory_space<vmem>>, %arg3: memref<1x32xf32, #tpu.memory_space<vmem>>, %arg4: memref<32x32xbf16, #tpu.memory_space<vmem>>, %arg5: memref<1x32xf32, #tpu.memory_space<vmem>>, %arg6: memref<32x4xbf16, #tpu.memory_space<vmem>>, %arg7: memref<1x4xf32, #tpu.memory_space<vmem>>, %arg8: memref<8x4xf32, #tpu.memory_space<vmem>>) attributes {dimension_semantics = [#tpu.dimension_semantics<parallel>], iteration_bounds = array<i64: 1>, scalar_prefetch = 0 : i64, scratch_operands = 0 : i64, tpu.core_type = #tpu.core_type<tc>, window_params = [{transform_indices = @transform_0, window_bounds = array<i64: 8, 8>}, {pipeline_mode = #tpu.pipeline_mode<synchronous>, transform_indices = @transform_1, window_bounds = array<i64: 8, 32>}, {pipeline_mode = #tpu.pipeline_mode<synchronous>, transform_indices = @transform_2, window_bounds = array<i64: 1, 32>}, {pipeline_mode = #tpu.pipeline_mode<synchronous>, transform_indices = @transform_3, window_bounds = array<i64: 32, 32>}, {pipeline_mode = #tpu.pipeline_mode<synchronous>, transform_indices = @transform_4, window_bounds = array<i64: 1, 32>}, {pipeline_mode = #tpu.pipeline_mode<synchronous>, transform_indices = @transform_5, window_bounds = array<i64: 32, 4>}, {pipeline_mode = #tpu.pipeline_mode<synchronous>, transform_indices = @transform_6, window_bounds = array<i64: 1, 4>}, {transform_indices = @transform_7, window_bounds = array<i64: 8, 4>}]} {
    %c0 = arith.constant 0 : index
    %c0_0 = arith.constant 0 : index
    %0 = vector.load %arg2[%c0, %c0_0] : memref<8x32xbf16, #tpu.memory_space<vmem>>, vector<8x32xbf16>
    %c0_1 = arith.constant 0 : index
    %c0_2 = arith.constant 0 : index
    %1 = vector.load %arg4[%c0_1, %c0_2] : memref<32x32xbf16, #tpu.memory_space<vmem>>, vector<32x32xbf16>
    %c0_3 = arith.constant 0 : index
    %c0_4 = arith.constant 0 : index
    %2 = vector.load %arg6[%c0_3, %c0_4] : memref<32x4xbf16, #tpu.memory_space<vmem>>, vector<32x4xbf16>
    %c0_5 = arith.constant 0 : index
    %c0_6 = arith.constant 0 : index
    %3 = vector.load %arg3[%c0_5, %c0_6] : memref<1x32xf32, #tpu.memory_space<vmem>>, vector<1x32xf32>
    %c0_7 = arith.constant 0 : index
    %c0_8 = arith.constant 0 : index
    %4 = vector.load %arg5[%c0_7, %c0_8] : memref<1x32xf32, #tpu.memory_space<vmem>>, vector<1x32xf32>
    %c0_9 = arith.constant 0 : index
    %c0_10 = arith.constant 0 : index
    %5 = vector.load %arg7[%c0_9, %c0_10] : memref<1x4xf32, #tpu.memory_space<vmem>>, vector<1x4xf32>
    %c0_11 = arith.constant 0 : index
    %c0_12 = arith.constant 0 : index
    %6 = vector.load %arg1[%c0_11, %c0_12] : memref<8x8xf32, #tpu.memory_space<vmem>>, vector<8x8xf32>
    %7 = arith.truncf %6 : vector<8x8xf32> to vector<8x8xbf16>
    %cst = arith.constant dense<0.000000e+00> : vector<8x32xf32>
    %8 = tpu.matmul %7, %0, %cst {dimension_numbers = #tpu.dot_dimension_numbers<[1], [0], [0], [1], [0, 0, 1, 1], [], []>} : vector<8x8xbf16>, vector<8x32xbf16>, vector<8x32xf32> -> vector<8x32xf32>
    %9 = vector.broadcast %3 : vector<1x32xf32> to vector<8x32xf32>
    %10 = arith.addf %8, %9 : vector<8x32xf32>
    %cst_13 = arith.constant 0.000000e+00 : f32
    %11 = vector.broadcast %cst_13 : f32 to vector<8x32xf32>
    %12 = arith.maximumf %10, %11 : vector<8x32xf32>
    %13 = arith.truncf %12 : vector<8x32xf32> to vector<8x32xbf16>
    %cst_14 = arith.constant dense<0.000000e+00> : vector<8x32xf32>
    %14 = tpu.matmul %13, %1, %cst_14 {dimension_numbers = #tpu.dot_dimension_numbers<[1], [0], [0], [1], [0, 0, 1, 1], [], []>} : vector<8x32xbf16>, vector<32x32xbf16>, vector<8x32xf32> -> vector<8x32xf32>
    %15 = vector.broadcast %4 : vector<1x32xf32> to vector<8x32xf32>
    %16 = arith.addf %14, %15 : vector<8x32xf32>
    %cst_15 = arith.constant 0.000000e+00 : f32
    %17 = vector.broadcast %cst_15 : f32 to vector<8x32xf32>
    %18 = arith.maximumf %16, %17 : vector<8x32xf32>
    %19 = arith.truncf %18 : vector<8x32xf32> to vector<8x32xbf16>
    %cst_16 = arith.constant dense<0.000000e+00> : vector<8x4xf32>
    %20 = tpu.matmul %19, %2, %cst_16 {dimension_numbers = #tpu.dot_dimension_numbers<[1], [0], [0], [1], [0, 0, 1, 1], [], []>} : vector<8x32xbf16>, vector<32x4xbf16>, vector<8x4xf32> -> vector<8x4xf32>
    %21 = vector.broadcast %5 : vector<1x4xf32> to vector<8x4xf32>
    %22 = arith.addf %20, %21 : vector<8x4xf32>
    %c0_17 = arith.constant 0 : index
    %c0_18 = arith.constant 0 : index
    %23 = vector.load %arg8[%c0_17, %c0_18] : memref<8x4xf32, #tpu.memory_space<vmem>>, vector<8x4xf32>
    tpu.vector_store %arg8[%c0_17, %c0_18], %22 {strides = array<i32>} : memref<8x4xf32, #tpu.memory_space<vmem>>, vector<8x4xf32>,
    return
  }
  func.func @transform_0(%arg0: i32) -> (i32, i32) {
    %c0_i32 = arith.constant 0 : i32
    %c0_i32_0 = arith.constant 0 : i32
    return %arg0, %c0_i32 : i32, i32
  }
  func.func @transform_1(%arg0: i32) -> (i32, i32) {
    %c0_i32 = arith.constant 0 : i32
    %c0_i32_0 = arith.constant 0 : i32
    %c0_i32_1 = arith.constant 0 : i32
    return %c0_i32, %c0_i32_0 : i32, i32
  }
  func.func @transform_2(%arg0: i32) -> (i32, i32) {
    %c0_i32 = arith.constant 0 : i32
    %c0_i32_0 = arith.constant 0 : i32
    %c0_i32_1 = arith.constant 0 : i32
    return %c0_i32, %c0_i32_0 : i32, i32
  }
  func.func @transform_3(%arg0: i32) -> (i32, i32) {
    %c0_i32 = arith.constant 0 : i32
    %c0_i32_0 = arith.constant 0 : i32
    %c0_i32_1 = arith.constant 0 : i32
    return %c0_i32, %c0_i32_0 : i32, i32
  }
  func.func @transform_4(%arg0: i32) -> (i32, i32) {
    %c0_i32 = arith.constant 0 : i32
    %c0_i32_0 = arith.constant 0 : i32
    %c0_i32_1 = arith.constant 0 : i32
    return %c0_i32, %c0_i32_0 : i32, i32
  }
  func.func @transform_5(%arg0: i32) -> (i32, i32) {
    %c0_i32 = arith.constant 0 : i32
    %c0_i32_0 = arith.constant 0 : i32
    %c0_i32_1 = arith.constant 0 : i32
    return %c0_i32, %c0_i32_0 : i32, i32
  }
  func.func @transform_6(%arg0: i32) -> (i32, i32) {
    %c0_i32 = arith.constant 0 : i32
    %c0_i32_0 = arith.constant 0 : i32
    %c0_i32_1 = arith.constant 0 : i32
    return %c0_i32, %c0_i32_0 : i32, i32
  }
  func.func @transform_7(%arg0: i32) -> (i32, i32) {
    %c0_i32 = arith.constant 0 : i32
    %c0_i32_0 = arith.constant 0 : i32
    return %arg0, %c0_i32 : i32, i32
  }
}

</mosaic_0001>

<llo_original>
// kernel: tpu_custom_call.1
$region0: #{tpu_custom_call.1}
  #allocation0 [shape = 'u32[]', space=smem, size = 0x4, offset = 0x4, fixed_abs, tag = 'smem constant byte address 0x4 - core index']
  #allocation1 [shape = 'u32[72,128]{1,0:T(1,128)}', space=vmem, size = 0x9000, scoped, tag = 'internal scratch']
  %s0 = inlined_call_operand.hbm [shape: f32[8,8], index: 0, kind: input, shape index: {}]
  %s1 = inlined_call_operand.vmem [shape: bf16[8,32], index: 1, kind: input, shape index: {}]
  %s2 = inlined_call_operand.hbm [shape: f32[1,32], index: 2, kind: input, shape index: {}]
  %s3 = inlined_call_operand.vmem [shape: bf16[32,32], index: 3, kind: input, shape index: {}]
  %s4 = inlined_call_operand.hbm [shape: f32[1,32], index: 4, kind: input, shape index: {}]
  %s5 = inlined_call_operand.vmem [shape: bf16[32,4], index: 5, kind: input, shape index: {}]
  %s6 = inlined_call_operand.vmem [shape: f32[1,4], index: 6, kind: input, shape index: {}]
  %s7 = inlined_call_operand.vmem [shape: f32[8,4], index: 7, kind: output, shape index: {}]
  %s8 = sld [smem:[#allocation0]]
  $region50: #{tpu_custom_call.1} parent=0
    _
  %s10 = ssub.s32 1, %s8
  %s11 = scalar_select 0, %s10, %s8
  $region1: #{tpu_custom_call.1} parent=0
    #allocation2 [shape = 'u8[4096]{0}', space=vmem, size = 0x1000, scoped, tag = 'input window, operand 0, single buffered']
    #allocation3 [shape = 's32[1]{0}', space=sflag, size = 0x4, scoped, tag = 'scoped memory for tpu_custom_call.1']
    #allocation4 [shape = 'u8[512]{0}', space=vmem, size = 0x400, scoped, tag = 'input window, operand 2, single buffered']
    #allocation5 [shape = 's32[1]{0}', space=sflag, size = 0x4, scoped, tag = 'scoped memory for tpu_custom_call.1']
    #allocation6 [shape = 'u8[512]{0}', space=vmem, size = 0x400, scoped, tag = 'input window, operand 4, single buffered']
    %12 = vsyncpa [#allocation3], 0
    %13 = vsyncpa [#allocation5], 0
    // Predicated region
    $region2: #{tpu_custom_call.1} parent=1 // pred_check
      _
    $region3: #{tpu_custom_call.1} parent=1 // pred_check_branch
      %15 = sbr.rel (0) target = $region5
    $region4: #{tpu_custom_call.1} parent=1 // pred_region
      %17 = vsyncadd [#allocation3], 0
      %s19 = sshll.u32 %s0, 4
      %s20 = int_to_ptr.hbm [resolvable:$true] %s19
      %s21 = sshll.u32 [#allocation2], 4
      %s22 = int_to_ptr.vmem [resolvable:$true] %s21
      %24 = dma.hbm_to_vmem [thread:$0]  %s20, 128, %s22, [#allocation3]
    $region5: #{tpu_custom_call.1} parent=1 // pred_fallthru
      _
    // Predicated region
    $region6: #{tpu_custom_call.1} parent=1 // pred_check
      _
    $region7: #{tpu_custom_call.1} parent=1 // pred_check_branch
      %26 = sbr.rel (0) target = $region9
    $region8: #{tpu_custom_call.1} parent=1 // pred_region
      _
    $region9: #{tpu_custom_call.1} parent=1 // pred_fallthru
      _
    // Predicated region
    $region10: #{tpu_custom_call.1} parent=1 // pred_check
      _
    $region11: #{tpu_custom_call.1} parent=1 // pred_check_branch
      %28 = sbr.rel (0) target = $region13
    $region12: #{tpu_custom_call.1} parent=1 // pred_region
      %30 = vsyncadd [#allocation5], 0
      %s32 = sshll.u32 %s2, 4
      %s33 = int_to_ptr.hbm [resolvable:$true] %s32
      %s34 = sshll.u32 [#allocation4], 4
      %s35 = int_to_ptr.vmem [resolvable:$true] %s34
      %37 = dma.hbm_to_vmem [thread:$0]  %s33, 16, %s35, [#allocation5]
    $region13: #{tpu_custom_call.1} parent=1 // pred_fallthru
      _
    // Predicated region
    $region14: #{tpu_custom_call.1} parent=1 // pred_check
      _
    $region15: #{tpu_custom_call.1} parent=1 // pred_check_branch
      %39 = sbr.rel (0) target = $region17
    $region16: #{tpu_custom_call.1} parent=1 // pred_region
      _
    $region17: #{tpu_custom_call.1} parent=1 // pred_fallthru
      _
    // Predicated region
    $region18: #{tpu_custom_call.1} parent=1 // pred_check
      _
    $region19: #{tpu_custom_call.1} parent=1 // pred_check_branch
      %41 = sbr.rel (0) target = $region21
    $region20: #{tpu_custom_call.1} parent=1 // pred_region
      %43 = vsyncadd [#allocation5], 0
      %s45 = sshll.u32 %s4, 4
      %s46 = int_to_ptr.hbm [resolvable:$true] %s45
      %s47 = sshll.u32 [#allocation6], 4
      %s48 = int_to_ptr.vmem [resolvable:$true] %s47
      %50 = dma.hbm_to_vmem [thread:$0]  %s46, 16, %s48, [#allocation5]
    $region21: #{tpu_custom_call.1} parent=1 // pred_fallthru
      _
    // Predicated region
    $region22: #{tpu_custom_call.1} parent=1 // pred_check
      _
    $region23: #{tpu_custom_call.1} parent=1 // pred_check_branch
      %52 = sbr.rel (0) target = $region25
    $region24: #{tpu_custom_call.1} parent=1 // pred_region
      _
    $region25: #{tpu_custom_call.1} parent=1 // pred_fallthru
      _
    // Predicated region
    $region26: #{tpu_custom_call.1} parent=1 // pred_check
      _
    $region27: #{tpu_custom_call.1} parent=1 // pred_check_branch
      %54 = sbr.rel (0) target = $region29
    $region28: #{tpu_custom_call.1} parent=1 // pred_region
      _
    $region29: #{tpu_custom_call.1} parent=1 // pred_fallthru
      _
    // Predicated region
    $region30: #{tpu_custom_call.1} parent=1 // pred_check
      _
    $region31: #{tpu_custom_call.1} parent=1 // pred_check_branch
      %56 = sbr.rel (0) target = $region33
    $region32: #{tpu_custom_call.1} parent=1 // pred_region
      %58 = dma.done [#allocation3], 128
    $region33: #{tpu_custom_call.1} parent=1 // pred_fallthru
      _
    // Predicated region
    $region34: #{tpu_custom_call.1} parent=1 // pred_check
      _
    $region35: #{tpu_custom_call.1} parent=1 // pred_check_branch
      %60 = sbr.rel (0) target = $region37
    $region36: #{tpu_custom_call.1} parent=1 // pred_region
      %62 = dma.done [#allocation5], 16
    $region37: #{tpu_custom_call.1} parent=1 // pred_fallthru
      _
    // Predicated region
    $region38: #{tpu_custom_call.1} parent=1 // pred_check
      _
    $region39: #{tpu_custom_call.1} parent=1 // pred_check_branch
      %64 = sbr.rel (0) target = $region41
    $region40: #{tpu_custom_call.1} parent=1 // pred_region
      %66 = dma.done [#allocation5], 16
    $region41: #{tpu_custom_call.1} parent=1 // pred_fallthru
      _
    %v68 = vld [vmem:[%s1] sm:$0xf]
    %v69 = vld [vmem:[%s3] sm:$0xf]
    %v70 = vld [vmem:[%s3 + $0x4] sm:$0xf]
    %v71 = vld [vmem:[%s3 + $0x8] sm:$0xf]
    %v72 = vld [vmem:[%s3 + $0xc] sm:$0xf]
    %v73 = vld [vmem:[%s5] sm:$0xf]
    %v74 = vld [vmem:[%s5 + $0x4] sm:$0xf]
    %v75 = vld [vmem:[%s5 + $0x8] sm:$0xf]
    %v76 = vld [vmem:[%s5 + $0xc] sm:$0xf]
    %v77 = vld [vmem:[#allocation4] sm:$0x1]
    %v78 = vld [vmem:[#allocation6] sm:$0x1]
    %v79 = vld [vmem:[%s6] sm:$0x1]
    %v80 = vld [vmem:[#allocation2] sm:$0xff]
    %v81 = vpack.c.bf16 %v80, %v80
    %v83 = vperm.slane %v77, 0
    %vm85 = vcmask 64512
    %v87 = vsel %vm85, %v81, 0
    %vm89 = vcmask 1043456
    %v91 = vsel %vm89, %v68, 0
    %93 = vmatpush.bf16.msra.mxu0 0
    %94 = vmatpush.bf16.msra.mxu0 0
    %95 = vmatpush.bf16.msra.mxu0 0
    %96 = vmatpush.bf16.msra.mxu0 0
    %97 = vmatpush.bf16.msra.mxu0 0
    %98 = vmatpush.bf16.msra.mxu0 0
    %99 = vmatpush.bf16.msra.mxu0 0
    %100 = vmatpush.bf16.msra.mxu0 %v91
    %101 = vmatmul.bf16.gmra.mxu0 %v87
    %v102 = vpop.f32.mrf.mxu0
    %v103 = vadd.f32 %v83, %v102
    %v104 = vpop.f32.mrf.mxu0
    %105 = vdwg.mxu0
    %v106 = vmax.f32 %v103, 0.0
    %v107 = vpack.c.bf16 %v106, %v106
    %v109 = vperm.slane %v78, 0
    %v115 = vunpack.c.l.b16 %v69
    %v116 = vunpack.c.l.b16 %v70
    %v117 = vunpack.c.l.b16 %v71
    %v118 = vunpack.c.l.b16 %v72
    %v119 = vpack.c.b16 %v116, %v115
    %v120 = vpack.c.b16 %v118, %v117
    %vm123 = vcmask 261120
    %v125 = vsel %vm123, %v107, 0
    %127 = vmatpush.bf16.msra.mxu0 0
    %128 = vmatpush.bf16.msra.mxu0 0
    %129 = vmatpush.bf16.msra.mxu0 0
    %130 = vmatpush.bf16.msra.mxu0 0
    %131 = vmatpush.bf16.msra.mxu0 0
    %132 = vmatpush.bf16.msra.mxu0 0
    %133 = vmatpush.bf16.msra.mxu0 %v120
    %134 = vmatpush.bf16.msra.mxu0 %v119
    %135 = vmatmul.bf16.gmra.mxu0 %v125
    %v136 = vpop.f32.mrf.mxu0
    %v137 = vadd.f32 %v109, %v136
    %v138 = vpop.f32.mrf.mxu0
    %139 = vdwg.mxu0
    %v140 = vmax.f32 %v137, 0.0
    %v141 = vpack.c.bf16 %v140, %v140
    %v143 = vperm.slane %v79, 0
    %v149 = vunpack.c.l.b16 %v73
    %v150 = vunpack.c.l.b16 %v74
    %v151 = vunpack.c.l.b16 %v75
    %v152 = vunpack.c.l.b16 %v76
    %v153 = vpack.c.b16 %v150, %v149
    %v154 = vpack.c.b16 %v152, %v151
    %v158 = vsel %vm123, %v141, 0
    %160 = vmatpush.bf16.msra.mxu0 0
    %161 = vmatpush.bf16.msra.mxu0 0
    %162 = vmatpush.bf16.msra.mxu0 0
    %163 = vmatpush.bf16.msra.mxu0 0
    %164 = vmatpush.bf16.msra.mxu0 0
    %165 = vmatpush.bf16.msra.mxu0 0
    %166 = vmatpush.bf16.msra.mxu0 %v154
    %167 = vmatpush.bf16.msra.mxu0 %v153
    %168 = vmatmul.bf16.gmra.mxu0 %v158
    %v169 = vpop.f32.mrf.mxu0
    %v170 = vadd.f32 %v143, %v169
    %v171 = vpop.f32.mrf.mxu0
    %172 = vdwg.mxu0
    %vm173 = vcmask 31744
    %174 = vst.msk [vmem:[%s7] sm:$0xff] %vm173, %v170
    // Predicated region
    $region42: #{tpu_custom_call.1} parent=1 // pred_check
      _
    $region43: #{tpu_custom_call.1} parent=1 // pred_check_branch
      %176 = sbr.rel (0) target = $region45
    $region44: #{tpu_custom_call.1} parent=1 // pred_region
      _
    $region45: #{tpu_custom_call.1} parent=1 // pred_fallthru
      _
    // Predicated region
    $region46: #{tpu_custom_call.1} parent=1 // pred_check
      _
    $region47: #{tpu_custom_call.1} parent=1 // pred_check_branch
      %178 = sbr.rel (0) target = $region49
    $region48: #{tpu_custom_call.1} parent=1 // pred_region
      _
    $region49: #{tpu_custom_call.1} parent=1 // pred_fallthru
      _
    %179 = vsyncpa [#allocation3], 1
    %180 = vsyncpa [#allocation5], 1

</llo_original>
